<compile_context>
chip_gen: v7x
topology: tpu7x:2x2x1
jax: 0.10.0
libtpu: 0.0.40
codegen_flags: <defaults>
</compile_context>

<pallas_src>
import functools

import jax
import jax.numpy as jnp
from jax import lax
from jax.experimental import pallas as pl
from jax.experimental.pallas import tpu as pltpu

_LANE = 128  # TPU lane width; channel tiles are kept lane-dense.


def _batch_renorm_kernel(eps, momentum, inv_nm1, tile_c, c_total, ragged, native_apply,
                         scal_ref,        # SMEM f32[2]      -> [r_max, d_max]
                         x_ref,           # VMEM (N, TC)     input tile (x.dtype)
                         rmean_ref,       # VMEM (1, TC) f32 running_mean tile
                         rvar_ref,        # VMEM (1, TC) f32 running_var tile
                         y_ref,           # VMEM (N, TC)     output tile (x.dtype)
                         new_rmean_ref,   # VMEM (1, TC) f32 updated running_mean
                         new_rvar_ref):   # VMEM (1, TC) f32 updated running_var
    # ---- per-feature batch statistics (two-pass form, numerically safer) ----
    x = x_ref[...].astype(jnp.float32)                             # (N, TC)
    mean = jnp.mean(x, axis=0, keepdims=True)                      # (1, TC)
    diff = x - mean
    var = jnp.sum(diff * diff, axis=0, keepdims=True) * inv_nm1    # unbiased
    var = var + eps                                                # (1, TC)

    r_max = scal_ref[0]
    d_max = scal_ref[1]

    rm = rmean_ref[...]                                            # (1, TC) f32
    rv = rvar_ref[...]                                             # (1, TC) f32

    if ragged:
        # Last channel tile extends past C: make padded lanes safe (they are
        # discarded on write, but keep them finite / divide-by-1 instead of
        # dividing by unspecified boundary-block data).
        col = lax.broadcasted_iota(jnp.int32, (1, tile_c), 1) + pl.program_id(0) * tile_c
        valid = col < c_total
        rv = jnp.where(valid, rv, 1.0)
        var = jnp.where(valid, var, 1.0)

    # One exact reciprocal per feature, shared across r / d / bn.
    inv_rv = pl.reciprocal(rv)
    inv_var = pl.reciprocal(var)

    r = jnp.clip(var * inv_rv, 1.0 / r_max, r_max)                 # (1, TC)
    d = jnp.clip((mean - rm) * inv_rv, -d_max, d_max)              # (1, TC)

    # y = ((x - mean) / var) * r + d  ==  x * a + b   with per-feature
    #   a = r / var,  b = d - mean * a
    a = r * inv_var
    b = d - mean * a

    # Apply phase: re-read x from VMEM (cheap) instead of keeping the f32 upcast
    # live across the whole body -> shorter vreg live ranges at large tiles.
    xa = x_ref[...]
    if native_apply:
        # bf16 hot path: per-feature a/b cast once, elementwise math stays packed bf16.
        y_ref[...] = (xa * a.astype(xa.dtype) + b.astype(xa.dtype)).astype(y_ref.dtype)
    else:
        y_ref[...] = (xa.astype(jnp.float32) * a + b).astype(y_ref.dtype)

    # Running-buffer updates (side-effect in torch; extra aliased outputs here).
    new_rmean_ref[...] = (rm + momentum * (mean - rm)).astype(new_rmean_ref.dtype)
    new_rvar_ref[...] = (rv + momentum * (var - rv)).astype(new_rvar_ref.dtype)


def batch_renorm1d_forward(x, running_mean, running_var, r_max, d_max,
                           *, eps=1e-5, momentum=0.1, tile_c=None,
                           vmem_budget_bytes=32 * 1024 * 1024,
                           vmem_hard_cap_bytes=48 * 1024 * 1024):
    """BatchRenorm1d forward. Returns (out, new_running_mean, new_running_var)."""
    n, c = x.shape
    x_bytes = jnp.dtype(x.dtype).itemsize

    # VMEM bytes per channel column: double-buffered x-in + y-out columns plus the
    # four double-buffered (1,) f32 stat columns.
    per_col_bytes = 4 * n * x_bytes + 8 * 4

    c_ceil = -(-c // _LANE) * _LANE  # channels rounded up to lane width

    if c <= _LANE:
        # Single full-width block: (n, c) equals the full array dims (always legal),
        # one grid step, no masking needed.
        tile_c = c
    else:
        if tile_c is None:
            tile_c = (vmem_budget_bytes // per_col_bytes) // _LANE * _LANE
        tile_c = (tile_c // _LANE) * _LANE
        if tile_c < _LANE:
            # Budget too small for even one 128-lane column tile (very large N);
            # fall back to the minimum lane-dense tile (checked against the cap below).
            tile_c = _LANE
        tile_c = min(tile_c, c_ceil)                # no bigger than needed
        if c_ceil >= 2 * _LANE:
            # v7x megacore: keep >= 2 channel tiles so the "parallel" grid axis can be
            # sharded across both TensorCores.
            half = (c_ceil // 2) // _LANE * _LANE
            tile_c = min(tile_c, max(half, _LANE))

    need_bytes = per_col_bytes * tile_c
    if need_bytes > vmem_hard_cap_bytes:
        # TODO(synk): add a batch-tiled (two-phase) grid over N for very large batches.
        raise ValueError(
            f"BatchRenorm1d Pallas kernel needs ~{need_bytes >> 20} MiB VMEM for a "
            f"{tile_c}-channel tile at batch={n}, exceeding the "
            f"{vmem_hard_cap_bytes >> 20} MiB cap; reduce batch size or add N-tiling.")

    # Explicit scoped-VMEM limit: actual need + headroom (stays under v7x's 64 MiB/TC).
    vmem_limit_bytes = int(max(need_bytes + (8 << 20), 16 << 20))

    grid = (-(-c // tile_c),)
    ragged = (c % tile_c) != 0

    rm = running_mean.astype(jnp.float32).reshape(1, c)
    rv = running_var.astype(jnp.float32).reshape(1, c)

    scal = jnp.stack([jnp.asarray(r_max, jnp.float32),
                      jnp.asarray(d_max, jnp.float32)])

    # Unbiased variance divisor; N == 1 reproduces torch's inf/nan quirk.
    inv_nm1 = (1.0 / (n - 1)) if n > 1 else float("nan")
    native_apply = (x.dtype == jnp.bfloat16)

    kernel = functools.partial(_batch_renorm_kernel,
                               float(eps), float(momentum), inv_nm1,
                               int(tile_c), int(c), bool(ragged), bool(native_apply))

    out, new_rm, new_rv = pl.pallas_call(
        kernel,
        grid=grid,
        out_shape=(
            jax.ShapeDtypeStruct((n, c), x.dtype),
            jax.ShapeDtypeStruct((1, c), jnp.float32),
            jax.ShapeDtypeStruct((1, c), jnp.float32),
        ),
        in_specs=[
            pl.BlockSpec(memory_space=pltpu.MemorySpace.SMEM),     # [r_max, d_max]
            pl.BlockSpec((n, tile_c), lambda j: (0, j)),           # x
            pl.BlockSpec((1, tile_c), lambda j: (0, j)),           # running_mean
            pl.BlockSpec((1, tile_c), lambda j: (0, j)),           # running_var
        ],
        out_specs=(
            pl.BlockSpec((n, tile_c), lambda j: (0, j)),           # y
            pl.BlockSpec((1, tile_c), lambda j: (0, j)),           # new running_mean
            pl.BlockSpec((1, tile_c), lambda j: (0, j)),           # new running_var
        ),
        # Re-use the running-stat buffers for their updated outputs.
        input_output_aliases={2: 1, 3: 2},
        compiler_params=pltpu.CompilerParams(
            dimension_semantics=("parallel",),      # shard channel tiles across TCs on v7x
            vmem_limit_bytes=vmem_limit_bytes),
    )(scal, x, rm, rv)

    return out, new_rm.reshape(c), new_rv.reshape(c)


def r_d_func(itr):
    """Deterministic renorm schedule: ramp r_max 1->3 and d_max 0->5 over 1000 iters."""
    t = min(float(itr) / 1000.0, 1.0)
    return 1.0 + 2.0 * t, 5.0 * t


def _reference(x_f32, rm, rv, r_max, d_max, eps, momentum):
    n = x_f32.shape[0]
    mean = jnp.mean(x_f32, axis=0, keepdims=True)
    var = jnp.sum((x_f32 - mean) ** 2, axis=0, keepdims=True) / (n - 1) + eps
    bn = (x_f32 - mean) / var
    r = jnp.clip(var / rv[None, :], 1.0 / r_max, r_max)
    d = jnp.clip((mean - rm[None, :]) / rv[None, :], -d_max, d_max)
    out = bn * r + d
    new_rm = rm + momentum * (mean[0] - rm)
    new_rv = rv + momentum * (var[0] - rv)
    return out, new_rm, new_rv


if __name__ == "__main__":
    key = jax.random.PRNGKey(0)
    kx1, kx2, kx3, krm, krv, kw = jax.random.split(key, 6)

    eps = 1e-5
    momentum = 0.1
    itr = 250
    r_max, d_max = r_d_func(itr)

    # ---- Test 1: small feature count (single full-width block), f32 ----------------
    n1, c1 = 8, 32
    x1 = jax.random.normal(kx1, (n1, c1), jnp.float32) * 2.0 + 0.5
    rm1 = jnp.zeros((c1,), jnp.float32)
    rv1 = jnp.ones((c1,), jnp.float32)
    weight = jax.random.uniform(kw, (c1,), jnp.float32)   # created by module, unused in forward
    bias = jnp.zeros((c1,), jnp.float32)                  # created by module, unused in forward

    ref_o1, ref_rm1, ref_rv1 = _reference(x1, rm1, rv1, r_max, d_max, eps, momentum)
    o1, nrm1, nrv1 = batch_renorm1d_forward(x1, rm1, rv1, r_max, d_max,
                                            eps=eps, momentum=momentum)
    jax.block_until_ready((o1, nrm1, nrv1))
    assert jnp.max(jnp.abs(o1 - ref_o1)) < 1e-4, "test1 output mismatch"
    assert jnp.max(jnp.abs(nrm1 - ref_rm1)) < 1e-5, "test1 running_mean mismatch"
    assert jnp.max(jnp.abs(nrv1 - ref_rv1)) < 1e-5, "test1 running_var mismatch"

    # ---- Test 2: ragged channel count (160 = 128 + 32), 2 tiles, f32 ----------------
    n2, c2 = 16, 160
    x2 = jax.random.normal(kx2, (n2, c2), jnp.float32) * 1.5 - 0.25
    rm2 = jax.random.normal(krm, (c2,), jnp.float32) * 0.2
    rv2 = 1.0 + 0.5 * jax.random.uniform(krv, (c2,), jnp.float32)

    ref_o2, ref_rm2, ref_rv2 = _reference(x2, rm2, rv2, r_max, d_max, eps, momentum)
    o2, nrm2, nrv2 = batch_renorm1d_forward(x2, rm2, rv2, r_max, d_max,
                                            eps=eps, momentum=momentum)
    jax.block_until_ready((o2, nrm2, nrv2))
    assert jnp.max(jnp.abs(o2 - ref_o2)) < 1e-4, "test2 output mismatch"
    assert jnp.max(jnp.abs(nrm2 - ref_rm2)) < 1e-5, "test2 running_mean mismatch"
    assert jnp.max(jnp.abs(nrv2 - ref_rv2)) < 1e-5, "test2 running_var mismatch"

    # ---- Test 3: bf16 input (native bf16 apply path), lane-aligned channels ---------
    n3, c3 = 8, 256
    x3 = (jax.random.normal(kx3, (n3, c3), jnp.float32) * 2.0 + 0.5).astype(jnp.bfloat16)
    rm3 = jnp.zeros((c3,), jnp.float32)
    rv3 = jnp.ones((c3,), jnp.float32)

    ref_o3, ref_rm3, ref_rv3 = _reference(x3.astype(jnp.float32), rm3, rv3,
                                          r_max, d_max, eps, momentum)
    o3, nrm3, nrv3 = batch_renorm1d_forward(x3, rm3, rv3, r_max, d_max,
                                            eps=eps, momentum=momentum)
    jax.block_until_ready((o3, nrm3, nrv3))
    assert o3.dtype == jnp.bfloat16
    assert jnp.max(jnp.abs(o3.astype(jnp.float32) - ref_o3)) < 1e-1, "test3 output mismatch"
    assert jnp.max(jnp.abs(nrm3 - ref_rm3)) < 1e-5, "test3 running_mean mismatch"
    assert jnp.max(jnp.abs(nrv3 - ref_rv3)) < 1e-5, "test3 running_var mismatch"

    print("KERNEL_OK")
</pallas_src>

<mosaic_0001>
module attributes {stable_mosaic.version = 11 : i64} {
  func.func @_batch_renorm_kernel(%arg0: i32, %arg1: memref<2xf32, #tpu.memory_space<smem>>, %arg2: memref<8x32xf32, #tpu.memory_space<vmem>>, %arg3: memref<1x32xf32, #tpu.memory_space<vmem>>, %arg4: memref<1x32xf32, #tpu.memory_space<vmem>>, %arg5: memref<8x32xf32, #tpu.memory_space<vmem>>, %arg6: memref<1x32xf32, #tpu.memory_space<vmem>>, %arg7: memref<1x32xf32, #tpu.memory_space<vmem>>) attributes {dimension_semantics = [#tpu.dimension_semantics<parallel>], iteration_bounds = array<i64: 1>, scalar_prefetch = 0 : i64, scratch_operands = 0 : i64, tpu.core_type = #tpu.core_type<tc>, window_params = [{transform_indices = @transform_0, window_bounds = array<i64: 2>}, {transform_indices = @transform_1, window_bounds = array<i64: 8, 32>}, {transform_indices = @transform_2, window_bounds = array<i64: 1, 32>}, {transform_indices = @transform_3, window_bounds = array<i64: 1, 32>}, {transform_indices = @transform_4, window_bounds = array<i64: 8, 32>}, {transform_indices = @transform_5, window_bounds = array<i64: 1, 32>}, {transform_indices = @transform_6, window_bounds = array<i64: 1, 32>}]} {
    %c0 = arith.constant 0 : index
    %c0_0 = arith.constant 0 : index
    %0 = vector.load %arg2[%c0, %c0_0] : memref<8x32xf32, #tpu.memory_space<vmem>>, vector<8x32xf32>
    %cst = arith.constant dense<0.000000e+00> : vector<32xf32>
    %1 = vector.multi_reduction <add>, %0, %cst [0] : vector<8x32xf32> to vector<32xf32>
    %2 = vector.shape_cast %1 : vector<32xf32> to vector<1x32xf32>
    %cst_1 = arith.constant 8.000000e+00 : f32
    %3 = vector.broadcast %cst_1 : f32 to vector<1x32xf32>
    %4 = arith.divf %2, %3 : vector<1x32xf32>
    %5 = vector.broadcast %4 : vector<1x32xf32> to vector<8x32xf32>
    %6 = arith.subf %0, %5 : vector<8x32xf32>
    %7 = arith.mulf %6, %6 : vector<8x32xf32>
    %cst_2 = arith.constant dense<0.000000e+00> : vector<32xf32>
    %8 = vector.multi_reduction <add>, %7, %cst_2 [0] : vector<8x32xf32> to vector<32xf32>
    %9 = vector.shape_cast %8 : vector<32xf32> to vector<1x32xf32>
    %cst_3 = arith.constant 0.142857149 : f32
    %10 = vector.broadcast %cst_3 : f32 to vector<1x32xf32>
    %11 = arith.mulf %9, %10 : vector<1x32xf32>
    %cst_4 = arith.constant 9.99999974E-6 : f32
    %12 = vector.broadcast %cst_4 : f32 to vector<1x32xf32>
    %13 = arith.addf %11, %12 : vector<1x32xf32>
    %c0_5 = arith.constant 0 : index
    %14 = memref.load %arg1[%c0_5] : memref<2xf32, #tpu.memory_space<smem>>
    %c1 = arith.constant 1 : index
    %15 = memref.load %arg1[%c1] : memref<2xf32, #tpu.memory_space<smem>>
    %c0_6 = arith.constant 0 : index
    %c0_7 = arith.constant 0 : index
    %16 = vector.load %arg3[%c0_6, %c0_7] : memref<1x32xf32, #tpu.memory_space<vmem>>, vector<1x32xf32>
    %c0_8 = arith.constant 0 : index
    %c0_9 = arith.constant 0 : index
    %17 = vector.load %arg4[%c0_8, %c0_9] : memref<1x32xf32, #tpu.memory_space<vmem>>, vector<1x32xf32>
    %18 = tpu.reciprocal %17 : vector<1x32xf32> -> vector<1x32xf32>
    %19 = tpu.reciprocal %13 : vector<1x32xf32> -> vector<1x32xf32>
    %20 = arith.mulf %13, %18 : vector<1x32xf32>
    %cst_10 = arith.constant 1.000000e+00 : f32
    %21 = arith.divf %cst_10, %14 : f32
    %22 = vector.broadcast %21 : f32 to vector<1x32xf32>
    %23 = arith.maximumf %22, %20 : vector<1x32xf32>
    %24 = vector.broadcast %14 : f32 to vector<1x32xf32>
    %25 = arith.minimumf %24, %23 : vector<1x32xf32>
    %26 = arith.subf %4, %16 : vector<1x32xf32>
    %27 = arith.mulf %26, %18 : vector<1x32xf32>
    %cst_11 = arith.constant 0.000000e+00 : f32
    %28 = arith.subf %cst_11, %15 : f32
    %29 = vector.broadcast %28 : f32 to vector<1x32xf32>
    %30 = arith.maximumf %29, %27 : vector<1x32xf32>
    %31 = vector.broadcast %15 : f32 to vector<1x32xf32>
    %32 = arith.minimumf %31, %30 : vector<1x32xf32>
    %33 = arith.mulf %25, %19 : vector<1x32xf32>
    %34 = arith.mulf %4, %33 : vector<1x32xf32>
    %35 = arith.subf %32, %34 : vector<1x32xf32>
    %c0_12 = arith.constant 0 : index
    %c0_13 = arith.constant 0 : index
    %36 = vector.load %arg2[%c0_12, %c0_13] : memref<8x32xf32, #tpu.memory_space<vmem>>, vector<8x32xf32>
    %37 = vector.broadcast %33 : vector<1x32xf32> to vector<8x32xf32>
    %38 = arith.mulf %36, %37 : vector<8x32xf32>
    %39 = vector.broadcast %35 : vector<1x32xf32> to vector<8x32xf32>
    %40 = arith.addf %38, %39 : vector<8x32xf32>
    %c0_14 = arith.constant 0 : index
    %c0_15 = arith.constant 0 : index
    %41 = vector.load %arg5[%c0_14, %c0_15] : memref<8x32xf32, #tpu.memory_space<vmem>>, vector<8x32xf32>
    tpu.vector_store %arg5[%c0_14, %c0_15], %40 {strides = array<i32>} : memref<8x32xf32, #tpu.memory_space<vmem>>, vector<8x32xf32>,
    %42 = arith.subf %4, %16 : vector<1x32xf32>
    %cst_16 = arith.constant 1.000000e-01 : f32
    %43 = vector.broadcast %cst_16 : f32 to vector<1x32xf32>
    %44 = arith.mulf %43, %42 : vector<1x32xf32>
    %45 = arith.addf %16, %44 : vector<1x32xf32>
    %c0_17 = arith.constant 0 : index
    %c0_18 = arith.constant 0 : index
    %46 = vector.load %arg6[%c0_17, %c0_18] : memref<1x32xf32, #tpu.memory_space<vmem>>, vector<1x32xf32>
    tpu.vector_store %arg6[%c0_17, %c0_18], %45 {strides = array<i32>} : memref<1x32xf32, #tpu.memory_space<vmem>>, vector<1x32xf32>,
    %47 = arith.subf %13, %17 : vector<1x32xf32>
    %cst_19 = arith.constant 1.000000e-01 : f32
    %48 = vector.broadcast %cst_19 : f32 to vector<1x32xf32>
    %49 = arith.mulf %48, %47 : vector<1x32xf32>
    %50 = arith.addf %17, %49 : vector<1x32xf32>
    %c0_20 = arith.constant 0 : index
    %c0_21 = arith.constant 0 : index
    %51 = vector.load %arg7[%c0_20, %c0_21] : memref<1x32xf32, #tpu.memory_space<vmem>>, vector<1x32xf32>
    tpu.vector_store %arg7[%c0_20, %c0_21], %50 {strides = array<i32>} : memref<1x32xf32, #tpu.memory_space<vmem>>, vector<1x32xf32>,
    return
  }
  func.func @transform_0(%arg0: i32) -> i32 {
    %c0_i32 = arith.constant 0 : i32
    %c0_i32_0 = arith.constant 0 : i32
    return %c0_i32 : i32
  }
  func.func @transform_1(%arg0: i32) -> (i32, i32) {
    %c0_i32 = arith.constant 0 : i32
    %c0_i32_0 = arith.constant 0 : i32
    return %c0_i32, %arg0 : i32, i32
  }
  func.func @transform_2(%arg0: i32) -> (i32, i32) {
    %c0_i32 = arith.constant 0 : i32
    %c0_i32_0 = arith.constant 0 : i32
    return %c0_i32, %arg0 : i32, i32
  }
  func.func @transform_3(%arg0: i32) -> (i32, i32) {
    %c0_i32 = arith.constant 0 : i32
    %c0_i32_0 = arith.constant 0 : i32
    return %c0_i32, %arg0 : i32, i32
  }
  func.func @transform_4(%arg0: i32) -> (i32, i32) {
    %c0_i32 = arith.constant 0 : i32
    %c0_i32_0 = arith.constant 0 : i32
    return %c0_i32, %arg0 : i32, i32
  }
  func.func @transform_5(%arg0: i32) -> (i32, i32) {
    %c0_i32 = arith.constant 0 : i32
    %c0_i32_0 = arith.constant 0 : i32
    return %c0_i32, %arg0 : i32, i32
  }
  func.func @transform_6(%arg0: i32) -> (i32, i32) {
    %c0_i32 = arith.constant 0 : i32
    %c0_i32_0 = arith.constant 0 : i32
    return %c0_i32, %arg0 : i32, i32
  }
}

</mosaic_0001>

<llo_original>
// kernel: tpu_custom_call.1
$region0: #{tpu_custom_call.1}
  #allocation0 [shape = 'u32[]', space=smem, size = 0x4, offset = 0x4, fixed_abs, tag = 'smem constant byte address 0x4 - core index']
  #allocation1 [shape = 'u32[144,128]{1,0:T(1,128)}', space=vmem, size = 0x12000, scoped, tag = 'internal scratch']
  %s0 = inlined_call_operand.vmem [shape: f32[2], index: 0, kind: input, shape index: {}]
  %s1 = inlined_call_operand.vmem [shape: f32[8,32], index: 1, kind: input, shape index: {}]
  %s2 = inlined_call_operand.hbm [shape: f32[1,32], index: 2, kind: input, shape index: {}, may-alias: {2,5}]
  %s3 = inlined_call_operand.hbm [shape: f32[1,32], index: 3, kind: input, shape index: {}, may-alias: {3,6}]
  %s4 = inlined_call_operand.hbm [shape: f32[8,32], index: 4, kind: output, shape index: {0}]
  %s5 = inlined_call_operand.hbm [shape: f32[1,32], index: 5, kind: output, shape index: {1}, may-alias: {2,5}]
  %s6 = inlined_call_operand.hbm [shape: f32[1,32], index: 6, kind: output, shape index: {2}, may-alias: {3,6}]
  %7 = xla_tuple %s4, %s5, %s6
  %s8 = sld [smem:[#allocation0]]
  $region54: #{tpu_custom_call.1} parent=0
    _
  %s10 = ssub.s32 1, %s8
  %s11 = scalar_select 0, %s10, %s8
  $region1: #{tpu_custom_call.1} parent=0
    #allocation2 [shape = 'u8[512]{0}', space=smem, size = 0x200, scoped, tag = 'input window, operand 0, single buffered']
    #allocation3 [shape = 's32[1]{0}', space=sflag, size = 0x4, scoped, tag = 'scoped memory for tpu_custom_call.1']
    #allocation4 [shape = 's32[1]{0}', space=sflag, size = 0x4, scoped, tag = 'scoped memory for tpu_custom_call.1']
    #allocation5 [shape = 's32[1]{0}', space=sflag, size = 0x4, scoped, tag = 'scoped memory for tpu_custom_call.1']
    #allocation6 [shape = 'u8[512]{0}', space=vmem, size = 0x400, scoped, tag = 'input window, operand 2, single buffered']
    #allocation7 [shape = 'u8[512]{0}', space=vmem, size = 0x400, scoped, tag = 'input window, operand 3, single buffered']
    #allocation8 [shape = 's32[1]{0}', space=sflag, size = 0x4, scoped, tag = 'scoped memory for tpu_custom_call.1']
    #allocation9 [shape = 'u8[4096]{0}', space=vmem, size = 0x1000, scoped, tag = 'output window, operand 0, single buffered']
    #allocation10 [shape = 'u8[512]{0}', space=vmem, size = 0x400, scoped, tag = 'output window, operand 1, single buffered']
    #allocation11 [shape = 's32[1]{0}', space=sflag, size = 0x4, scoped, tag = 'scoped memory for tpu_custom_call.1']
    #allocation12 [shape = 'u8[512]{0}', space=vmem, size = 0x400, scoped, tag = 'output window, operand 2, single buffered']
    %12 = vsyncpa [#allocation5], 0
    %13 = vsyncpa [#allocation3], 0
    %14 = vsyncpa [#allocation8], 0
    %15 = vsyncpa [#allocation4], 0
    %16 = vsyncpa [#allocation11], 0
    // Predicated region
    $region2: #{tpu_custom_call.1} parent=1 // pred_check
      _
    $region3: #{tpu_custom_call.1} parent=1 // pred_check_branch
      %18 = sbr.rel (0) target = $region5
    $region4: #{tpu_custom_call.1} parent=1 // pred_region
      %s20 = ssub.s32 16, 16
      %21 = vsyncadd [#allocation5], %s20
      %s23 = sshll.u32 %s0, 4
      %s24 = int_to_ptr.vmem [resolvable:$true] %s23
      %26 = dma.vmem_to_smem %s24, 16, [#allocation2], [#allocation5]
    $region5: #{tpu_custom_call.1} parent=1 // pred_fallthru
      _
    // Predicated region
    $region6: #{tpu_custom_call.1} parent=1 // pred_check
      _
    $region7: #{tpu_custom_call.1} parent=1 // pred_check_branch
      %28 = sbr.rel (0) target = $region9
    $region8: #{tpu_custom_call.1} parent=1 // pred_region
      _
    $region9: #{tpu_custom_call.1} parent=1 // pred_fallthru
      _
    // Predicated region
    $region10: #{tpu_custom_call.1} parent=1 // pred_check
      _
    $region11: #{tpu_custom_call.1} parent=1 // pred_check_branch
      %30 = sbr.rel (0) target = $region13
    $region12: #{tpu_custom_call.1} parent=1 // pred_region
      %s32 = ssub.s32 16, 16
      %33 = vsyncadd [#allocation3], %s32
      %s35 = sshll.u32 [#allocation6], 4
      %s36 = int_to_ptr.vmem [resolvable:$true] %s35
      %38 = dma.hbm_to_vmem [thread:$0]  %s2, 16, %s36, [#allocation3]
    $region13: #{tpu_custom_call.1} parent=1 // pred_fallthru
      _
    // Predicated region
    $region14: #{tpu_custom_call.1} parent=1 // pred_check
      _
    $region15: #{tpu_custom_call.1} parent=1 // pred_check_branch
      %40 = sbr.rel (0) target = $region17
    $region16: #{tpu_custom_call.1} parent=1 // pred_region
      %s42 = ssub.s32 16, 16
      %43 = vsyncadd [#allocation8], %s42
      %s45 = sshll.u32 [#allocation7], 4
      %s46 = int_to_ptr.vmem [resolvable:$true] %s45
      %48 = dma.hbm_to_vmem [thread:$0]  %s3, 16, %s46, [#allocation8]
    $region17: #{tpu_custom_call.1} parent=1 // pred_fallthru
      _
    // Predicated region
    $region18: #{tpu_custom_call.1} parent=1 // pred_check
      _
    $region19: #{tpu_custom_call.1} parent=1 // pred_check_branch
      %50 = sbr.rel (0) target = $region21
    $region20: #{tpu_custom_call.1} parent=1 // pred_region
      %51 = dma.done [#allocation5], 16
    $region21: #{tpu_custom_call.1} parent=1 // pred_fallthru
      _
    // Predicated region
    $region22: #{tpu_custom_call.1} parent=1 // pred_check
      _
    $region23: #{tpu_custom_call.1} parent=1 // pred_check_branch
      %53 = sbr.rel (0) target = $region25
    $region24: #{tpu_custom_call.1} parent=1 // pred_region
      %54 = dma.done [#allocation3], 16
    $region25: #{tpu_custom_call.1} parent=1 // pred_fallthru
      _
    // Predicated region
    $region26: #{tpu_custom_call.1} parent=1 // pred_check
      _
    $region27: #{tpu_custom_call.1} parent=1 // pred_check_branch
      %56 = sbr.rel (0) target = $region29
    $region28: #{tpu_custom_call.1} parent=1 // pred_region
      %57 = dma.done [#allocation8], 16
    $region29: #{tpu_custom_call.1} parent=1 // pred_fallthru
      _
    %58 = sfence
    %v59 = vld [vmem:[%s1] sm:$0xff]
    %vm60 = vcmask 261120
    %v61 = vsel %vm60, %v59, 0.0
    %v62 = vrot.slane %v61, 4
    %v63 = vadd.f32 %v61, %v62
    %v64 = vrot.slane %v63, 2
    %v65 = vadd.f32 %v63, %v64
    %v66 = vrot.slane %v65, 1
    %v67 = vadd.f32 %v65, %v66
    %v68 = vrcp.pop 8.0
    %v69 = vmul.f32 %v67, %v68
    %v70 = vsub.f32 %v59, %v69
    %v71 = vmul.f32 %v70, %v70
    %v72 = vsel %vm60, %v71, 0.0
    %v73 = vrot.slane %v72, 4
    %v74 = vadd.f32 %v72, %v73
    %v75 = vrot.slane %v74, 2
    %v76 = vadd.f32 %v74, %v75
    %v77 = vrot.slane %v76, 1
    %v78 = vadd.f32 %v76, %v77
    %v79 = vmul.f32 %v78, 0.14285715
    %v80 = vadd.f32 %v79, 1e-05
    %s81 = sld [smem:[#allocation2]]
    %s82 = sld [smem:[#allocation2 + $0x1]]
    %v83 = vld [vmem:[#allocation6] sm:$0x1]
    %v84 = vld [vmem:[#allocation7] sm:$0x1]
    %v85 = vrcp.pop %v84
    %v86 = vrcp.pop %v80
    %v87 = vmul.f32 %v80, %v85
    %v88 = vstv %s81
    %v89 = vrcp.pop %v88
    %s90 = vtos %v89
    %v91 = vstv %s90
    %v92 = vmax.f32 %v91, %v87
    %v93 = vstv %s81
    %v94 = vmin.f32 %v93, %v92
    %v95 = vsub.f32 %v69, %v83
    %v96 = vmul.f32 %v95, %v85
    %s97 = ssub.f32 0.0, %s82
    %v98 = vstv %s97
    %v99 = vmax.f32 %v98, %v96
    %v100 = vstv %s82
    %v101 = vmin.f32 %v100, %v99
    %v102 = vmul.f32 %v94, %v86
    %v103 = vmul.f32 %v69, %v102
    %v104 = vsub.f32 %v101, %v103
    %v105 = vlaneseq
    %v106 = vshrl.u32 %v105, 7
    %v107 = vsub.s32 0, %v106
    %v108 = vrot.slane %v102, %v107
    %v109 = vmul.f32 %v59, %v108
    %v110 = vlaneseq
    %v111 = vshrl.u32 %v110, 7
    %v112 = vsub.s32 0, %v111
    %v113 = vrot.slane %v104, %v112
    %v114 = vadd.f32 %v109, %v113
    %115 = vst.msk [vmem:[#allocation9] sm:$0xff] %vm60, %v114
    %v116 = vmul.f32 %v95, 0.1
    %v117 = vadd.f32 %v83, %v116
    %vm118 = vcmask 253952
    %119 = vst.msk [vmem:[#allocation10] sm:$0x1] %vm118, %v117
    %v120 = vsub.f32 %v80, %v84
    %v121 = vmul.f32 %v120, 0.1
    %v122 = vadd.f32 %v84, %v121
    %123 = vst.msk [vmem:[#allocation12] sm:$0x1] %vm118, %v122
    // Predicated region
    $region30: #{tpu_custom_call.1} parent=1 // pred_check
      _
    $region31: #{tpu_custom_call.1} parent=1 // pred_check_branch
      %125 = sbr.rel (0) target = $region33
    $region32: #{tpu_custom_call.1} parent=1 // pred_region
      %s127 = ssub.s32 128, 128
      %128 = vsyncadd [#allocation4], %s127
      %s130 = sshll.u32 [#allocation9], 4
      %s131 = int_to_ptr.vmem [resolvable:$true] %s130
      %133 = dma.vmem_to_hbm [thread:$0]  %s131, 128, %s4, [#allocation4]
    $region33: #{tpu_custom_call.1} parent=1 // pred_fallthru
      _
    // Predicated region
    $region34: #{tpu_custom_call.1} parent=1 // pred_check
      _
    $region35: #{tpu_custom_call.1} parent=1 // pred_check_branch
      %135 = sbr.rel (0) target = $region37
    $region36: #{tpu_custom_call.1} parent=1 // pred_region
      %s137 = ssub.s32 16, 16
      %138 = vsyncadd [#allocation11], %s137
      %s140 = sshll.u32 [#allocation10], 4
      %s141 = int_to_ptr.vmem [resolvable:$true] %s140
      %143 = dma.vmem_to_hbm [thread:$0]  %s141, 16, %s5, [#allocation11]
    $region37: #{tpu_custom_call.1} parent=1 // pred_fallthru
      _
    // Predicated region
    $region38: #{tpu_custom_call.1} parent=1 // pred_check
      _
    $region39: #{tpu_custom_call.1} parent=1 // pred_check_branch
      %145 = sbr.rel (0) target = $region41
    $region40: #{tpu_custom_call.1} parent=1 // pred_region
      %s147 = ssub.s32 16, 16
      %148 = vsyncadd [#allocation11], %s147
      %s150 = sshll.u32 [#allocation12], 4
      %s151 = int_to_ptr.vmem [resolvable:$true] %s150
      %153 = dma.vmem_to_hbm [thread:$0]  %s151, 16, %s6, [#allocation11]
    $region41: #{tpu_custom_call.1} parent=1 // pred_fallthru
      _
    // Predicated region
    $region42: #{tpu_custom_call.1} parent=1 // pred_check
      _
    $region43: #{tpu_custom_call.1} parent=1 // pred_check_branch
      %155 = sbr.rel (0) target = $region45
    $region44: #{tpu_custom_call.1} parent=1 // pred_region
      %156 = dma.done [#allocation4], 128
    $region45: #{tpu_custom_call.1} parent=1 // pred_fallthru
      _
    // Predicated region
    $region46: #{tpu_custom_call.1} parent=1 // pred_check
      _
    $region47: #{tpu_custom_call.1} parent=1 // pred_check_branch
      %158 = sbr.rel (0) target = $region49
    $region48: #{tpu_custom_call.1} parent=1 // pred_region
      %159 = dma.done [#allocation11], 16
    $region49: #{tpu_custom_call.1} parent=1 // pred_fallthru
      _
    // Predicated region
    $region50: #{tpu_custom_call.1} parent=1 // pred_check
      _
    $region51: #{tpu_custom_call.1} parent=1 // pred_check_branch
      %161 = sbr.rel (0) target = $region53
    $region52: #{tpu_custom_call.1} parent=1 // pred_region
      %162 = dma.done [#allocation11], 16
    $region53: #{tpu_custom_call.1} parent=1 // pred_fallthru
      _
    %163 = vsyncpa [#allocation3], 1
    %164 = vsyncpa [#allocation8], 1
    %165 = vsyncpa [#allocation4], 1
    %166 = vsyncpa [#allocation11], 1
    %167 = vsyncpa [#allocation5], 1

</llo_original>
